<compile_context>
chip_gen: v7x
topology: tpu7x:2x2x1
jax: 0.10.0
libtpu: 0.0.40
codegen_flags: <defaults>
</compile_context>

<pallas_src>
import jax
import jax.numpy as jnp
from jax import lax
from jax.experimental import pallas as pl
from jax.experimental.pallas import tpu as pltpu


_LANE = 128
_DEF_TILE_N = 1024      # preferred rows per block (amortizes ~0.35us/grid-step)
_MAX_TILE_C = 2048      # class-axis tile (multiple of 128) used when C is large


def _round_up(x, m):
    return ((x + m - 1) // m) * m


def _tpu_config():
    """Generation-aware VMEM budgets + megacore hint.

    v5e/v6e: 128 MiB physical VMEM, single TensorCore -> big tiles, no split.
    v7x:      64 MiB physical VMEM, 2 TensorCores     -> tighter budget, keep
              >= ~4 row tiles so both cores get grid steps.
    """
    try:
        vmem = int(pltpu.get_tpu_info().vmem_capacity_bytes)
    except Exception:
        vmem = 64 << 20                       # conservative (v7x-sized) fallback
    if vmem >= (96 << 20):                    # v5e / v6e (128 MiB physical)
        return dict(vmem_limit=100 << 20, tile_budget=64 << 20, multicore=False)
    return dict(vmem_limit=48 << 20, tile_budget=20 << 20, multicore=True)


def _pick_tiles(n, c, itemsize, extra_bytes_per_elem, cfg):
    """Pick (tile_n, tile_c).

    tile_c spans full C when modest, else a 128-multiple chunk so VMEM stays
    bounded for huge class counts.  tile_n is the largest 128-multiple whose
    double-buffered probs block plus in-kernel intermediates fits the budget,
    capped so v7x's two TensorCores both get work, and clamped to the data.
    """
    tc = c if c <= _MAX_TILE_C else _MAX_TILE_C
    bytes_per_row = tc * (2 * itemsize + extra_bytes_per_elem)  # 2x = double buffer
    tn = (cfg["tile_budget"] // max(bytes_per_row, 1)) // _LANE * _LANE
    tn = max(_LANE, min(_DEF_TILE_N, tn))
    if cfg["multicore"]:
        # keep >= ~4 row tiles only on the 2-TensorCore part (v7x)
        tn = min(tn, max(_LANE, _round_up(pl.cdiv(n, 4), _LANE)))
    tn = min(tn, _round_up(n, 8))             # don't vastly overshoot small n
    return max(8, (tn // 8) * 8), tc


# ----------------------------------------------------------------------------- #
# Kernel 1: nonconformity scores for the calibration set.
#   score = 1 - probs[row, target[row]]
# Grid = (row tiles [parallel], class tiles [arbitrary]).  The lane-dense
# (1, tile_n) score row is resident across the class axis and used directly as
# the accumulator: init to 1.0 at class-tile 0, subtract the partial true-class
# probability each step.
# ----------------------------------------------------------------------------- #
def _nonconformity_kernel(probs_ref, targets_ref, score_ref):
    j = pl.program_id(1)
    tc = probs_ref.shape[1]

    @pl.when(j == 0)
    def _():
        score_ref[...] = jnp.ones_like(score_ref)

    p = probs_ref[...].astype(jnp.float32)                        # (TN, TC)
    tgt_col = targets_ref[...].T                                  # (1,TN)->(TN,1), XLU relayout
    cls = lax.broadcasted_iota(jnp.int32, p.shape, 1) + j * tc    # global class ids
    true_p = jnp.sum(jnp.where(cls == tgt_col, p, 0.0),
                     axis=-1, keepdims=True)                      # (TN, 1)
    score_ref[...] -= true_p.T                                    # lane-dense (1, TN)


def nonconformity_scores(calib_probs, calib_targets):
    n, c = calib_probs.shape
    cfg = _tpu_config()
    # extra ~12 B/elem: f32 upcast + int32 iota + where intermediate
    tn, tc = _pick_tiles(n, c, calib_probs.dtype.itemsize, 12, cfg)
    num_row_tiles = pl.cdiv(n, tn)
    num_cls_tiles = pl.cdiv(c, tc)
    n_pad = num_row_tiles * tn

    # Targets: tiny int32 array -> pad (cheap) and lay out lane-dense.
    tgt = calib_targets.astype(jnp.int32)
    if n_pad != n:
        tgt = jnp.pad(tgt, (0, n_pad - n))
    tgt = tgt.reshape(num_row_tiles, tn)

    scores = pl.pallas_call(
        _nonconformity_kernel,
        out_shape=jax.ShapeDtypeStruct((num_row_tiles, tn), jnp.float32),
        grid_spec=pltpu.PrefetchScalarGridSpec(
            num_scalar_prefetch=0,
            grid=(num_row_tiles, num_cls_tiles),
            in_specs=[
                pl.BlockSpec((tn, tc), lambda i, j: (i, j)),   # probs (ragged rows OK)
                pl.BlockSpec((1, tn), lambda i, j: (i, 0)),    # lane-dense targets
            ],
            out_specs=pl.BlockSpec((1, tn), lambda i, j: (i, 0)),
        ),
        compiler_params=pltpu.CompilerParams(
            dimension_semantics=("parallel", "arbitrary"),
            vmem_limit_bytes=cfg["vmem_limit"]),
    )(calib_probs, tgt)
    # Garbage lanes from ragged last row-tile are sliced off here.
    return scores.reshape(-1)[:n]


# ----------------------------------------------------------------------------- #
# Kernel 2: prediction sets (forward pass).
#   mask[n, c] = 1 if probs[n, c] >= 1 - q_hat else 0   (int8 output)
# q_hat is a scalar prefetched into SMEM; compare happens in the probs' native
# dtype (bf16 stays bf16); boolean cast to int8, no int32 select intermediate.
# ----------------------------------------------------------------------------- #
def _prediction_set_kernel(qhat_ref, probs_ref, mask_ref):
    p = probs_ref[...]
    thresh = (1.0 - qhat_ref[0]).astype(p.dtype)
    mask_ref[...] = (p >= thresh).astype(mask_ref.dtype)


def prediction_sets(probs, q_hat, out_dtype=jnp.int8):
    n, c = probs.shape
    cfg = _tpu_config()
    # extra ~8 B/elem: double-buffered int8 out + bool/compare intermediates
    tn, tc = _pick_tiles(n, c, probs.dtype.itemsize, 8, cfg)
    qhat_arr = jnp.asarray(q_hat, dtype=jnp.float32).reshape((1,))

    mask = pl.pallas_call(
        _prediction_set_kernel,
        out_shape=jax.ShapeDtypeStruct((n, c), out_dtype),
        grid_spec=pltpu.PrefetchScalarGridSpec(
            num_scalar_prefetch=1,
            grid=(pl.cdiv(n, tn), pl.cdiv(c, tc)),
            in_specs=[pl.BlockSpec((tn, tc), lambda i, j, qhat: (i, j))],
            out_specs=pl.BlockSpec((tn, tc), lambda i, j, qhat: (i, j)),
        ),
        compiler_params=pltpu.CompilerParams(
            dimension_semantics=("parallel", "parallel"),
            vmem_limit_bytes=cfg["vmem_limit"]),
    )(qhat_arr, probs)
    return mask     # ragged-block OOB writes are dropped; shape already (n, c)


# ----------------------------------------------------------------------------- #
# Module-equivalent wrapper
# ----------------------------------------------------------------------------- #
class ConformalPredictionPallas:
    def __init__(self, alpha):
        self.alpha = float(alpha)
        self.q_hat = None

    def solve_nonconformity_score(self, calib_probs, calib_targets):
        return nonconformity_scores(calib_probs, calib_targets)

    def solve_qhat(self, calib_probs, calib_targets):
        scores = self.solve_nonconformity_score(calib_probs, calib_targets)
        # quantile glue stays in plain JAX; matches np.quantile(..., 'higher')
        # TODO(synk): the spec's DataLoader iteration over calibration batches is
        # replaced by a single (probs, targets) array pair.
        self.q_hat = jnp.quantile(scores, 1.0 - self.alpha, method="higher")
        return self.q_hat

    def solve_prediction_sets(self, probability):
        assert self.q_hat is not None, "call solve_qhat first"
        return prediction_sets(probability, self.q_hat)

    def __call__(self, X):
        return self.solve_prediction_sets(X)


if __name__ == "__main__":
    key = jax.random.PRNGKey(0)
    k1, k2, k3 = jax.random.split(key, 3)

    n_calib, n_test, n_classes = 64, 8, 32

    # deterministic synthetic probabilities (softmax of random logits) + labels
    calib_logits = jax.random.normal(k1, (n_calib, n_classes), jnp.float32)
    calib_probs = jax.nn.softmax(calib_logits, axis=-1)
    calib_targets = jax.random.randint(k2, (n_calib,), 0, n_classes)

    test_logits = jax.random.normal(k3, (n_test, n_classes), jnp.float32)
    test_probs = jax.nn.softmax(test_logits, axis=-1)

    cp = ConformalPredictionPallas(alpha=0.1)
    q_hat = cp.solve_qhat(calib_probs, calib_targets)
    sets = cp(test_probs)
    jax.block_until_ready(sets)

    # reference check (plain JAX)
    ref_scores = 1.0 - calib_probs[jnp.arange(n_calib), calib_targets]
    ref_qhat = jnp.quantile(ref_scores, 1.0 - cp.alpha, method="higher")
    ref_sets = (test_probs >= 1.0 - ref_qhat)
    assert jnp.allclose(q_hat, ref_qhat, atol=1e-6)
    assert jnp.array_equal(sets.astype(bool), ref_sets)
    assert sets.shape == (n_test, n_classes) and sets.dtype == jnp.int8

    print("KERNEL_OK")
</pallas_src>

<mosaic_0001>
module attributes {stable_mosaic.version = 11 : i64} {
  func.func @_nonconformity_kernel(%arg0: i32, %arg1: i32, %arg2: memref<64x32xf32, #tpu.memory_space<vmem>>, %arg3: memref<1x64xi32, #tpu.memory_space<vmem>>, %arg4: memref<1x64xf32, #tpu.memory_space<vmem>>) attributes {dimension_semantics = [#tpu.dimension_semantics<parallel>, #tpu.dimension_semantics<arbitrary>], iteration_bounds = array<i64: 1, 1>, scalar_prefetch = 0 : i64, scratch_operands = 0 : i64, tpu.core_type = #tpu.core_type<tc>, window_params = [{transform_indices = @transform_0, window_bounds = array<i64: 64, 32>}, {transform_indices = @transform_1, window_bounds = array<i64: 1, 64>}, {transform_indices = @transform_2, window_bounds = array<i64: 1, 64>}]} {
    %c0_i32 = arith.constant 0 : i32
    %0 = arith.cmpi eq, %arg1, %c0_i32 : i32
    %1 = arith.extui %0 : i1 to i32
    %c0_i32_0 = arith.constant 0 : i32
    %2 = arith.cmpi ne, %1, %c0_i32_0 : i32
    scf.if %2 {
      %cst_9 = arith.constant 1.000000e+00 : f32
      %20 = vector.broadcast %cst_9 : f32 to vector<1x64xf32>
      %c0_10 = arith.constant 0 : index
      %c0_11 = arith.constant 0 : index
      %21 = vector.load %arg4[%c0_10, %c0_11] : memref<1x64xf32, #tpu.memory_space<vmem>>, vector<1x64xf32>
      tpu.vector_store %arg4[%c0_10, %c0_11], %20 {strides = array<i32>} : memref<1x64xf32, #tpu.memory_space<vmem>>, vector<1x64xf32>,
    } else {
    }
    %c0 = arith.constant 0 : index
    %c0_1 = arith.constant 0 : index
    %3 = vector.load %arg2[%c0, %c0_1] : memref<64x32xf32, #tpu.memory_space<vmem>>, vector<64x32xf32>
    %c0_2 = arith.constant 0 : index
    %c0_3 = arith.constant 0 : index
    %4 = vector.load %arg3[%c0_2, %c0_3] : memref<1x64xi32, #tpu.memory_space<vmem>>, vector<1x64xi32>
    %5 = tpu.transpose %4, [1, 0] : vector<1x64xi32> -> vector<64x1xi32>
    %6 = tpu.iota {dimensions = array<i32: 1>} : vector<64x32xi32>
    %c32_i32 = arith.constant 32 : i32
    %7 = arith.muli %arg1, %c32_i32 : i32
    %8 = vector.broadcast %7 : i32 to vector<64x32xi32>
    %9 = arith.addi %6, %8 : vector<64x32xi32>
    %10 = vector.broadcast %5 : vector<64x1xi32> to vector<64x32xi32>
    %11 = arith.cmpi eq, %9, %10 : vector<64x32xi32>
    %cst = arith.constant 0.000000e+00 : f32
    %12 = vector.broadcast %cst : f32 to vector<64x32xf32>
    %13 = arith.select %11, %3, %12 : vector<64x32xi1>, vector<64x32xf32>
    %cst_4 = arith.constant dense<0.000000e+00> : vector<64xf32>
    %14 = vector.multi_reduction <add>, %13, %cst_4 [1] : vector<64x32xf32> to vector<64xf32>
    %15 = vector.shape_cast %14 : vector<64xf32> to vector<64x1xf32>
    %c0_5 = arith.constant 0 : index
    %c0_6 = arith.constant 0 : index
    %16 = vector.load %arg4[%c0_5, %c0_6] : memref<1x64xf32, #tpu.memory_space<vmem>>, vector<1x64xf32>
    %17 = tpu.transpose %15, [1, 0] : vector<64x1xf32> -> vector<1x64xf32>
    %18 = arith.subf %16, %17 : vector<1x64xf32>
    %c0_7 = arith.constant 0 : index
    %c0_8 = arith.constant 0 : index
    %19 = vector.load %arg4[%c0_7, %c0_8] : memref<1x64xf32, #tpu.memory_space<vmem>>, vector<1x64xf32>
    tpu.vector_store %arg4[%c0_7, %c0_8], %18 {strides = array<i32>} : memref<1x64xf32, #tpu.memory_space<vmem>>, vector<1x64xf32>,
    return
  }
  func.func @transform_0(%arg0: i32, %arg1: i32) -> (i32, i32) {
    %c0_i32 = arith.constant 0 : i32
    return %arg0, %arg1 : i32, i32
  }
  func.func @transform_1(%arg0: i32, %arg1: i32) -> (i32, i32) {
    %c0_i32 = arith.constant 0 : i32
    %c0_i32_0 = arith.constant 0 : i32
    return %arg0, %c0_i32 : i32, i32
  }
  func.func @transform_2(%arg0: i32, %arg1: i32) -> (i32, i32) {
    %c0_i32 = arith.constant 0 : i32
    %c0_i32_0 = arith.constant 0 : i32
    return %arg0, %c0_i32 : i32, i32
  }
}

</mosaic_0001>

<llo_original>
// kernel: tpu_custom_call.1
$region0: #{tpu_custom_call.1}
  #allocation0 [shape = 'u32[]', space=smem, size = 0x4, offset = 0x4, fixed_abs, tag = 'smem constant byte address 0x4 - core index']
  #allocation1 [shape = 'u32[144,128]{1,0:T(1,128)}', space=vmem, size = 0x12000, scoped, tag = 'internal scratch']
  %s0 = inlined_call_operand.vmem [shape: f32[64,32], index: 0, kind: input, shape index: {}]
  %s1 = inlined_call_operand.vmem [shape: s32[1,64], index: 1, kind: input, shape index: {}]
  %s2 = inlined_call_operand.hbm [shape: f32[1,64], index: 2, kind: output, shape index: {}]
  %s3 = sld [smem:[#allocation0]]
  $region22: #{tpu_custom_call.1} parent=0
    _
  %s5 = ssub.s32 1, %s3
  %s6 = scalar_select 0, %s5, %s3
  $region1: #{tpu_custom_call.1} parent=0
    #allocation2 [shape = 'u8[512]{0}', space=vmem, size = 0x400, scoped, tag = 'output window, operand 0, single buffered']
    #allocation3 [shape = 's32[1]{0}', space=sflag, size = 0x4, scoped, tag = 'scoped memory for tpu_custom_call.1']
    %7 = vsyncpa [#allocation3], 0
    // Predicated region
    $region2: #{tpu_custom_call.1} parent=1 // pred_check
      _
    $region3: #{tpu_custom_call.1} parent=1 // pred_check_branch
      %9 = sbr.rel (0) target = $region5
    $region4: #{tpu_custom_call.1} parent=1 // pred_region
      _
    $region5: #{tpu_custom_call.1} parent=1 // pred_fallthru
      _
    // Predicated region
    $region6: #{tpu_custom_call.1} parent=1 // pred_check
      _
    $region7: #{tpu_custom_call.1} parent=1 // pred_check_branch
      %11 = sbr.rel (0) target = $region9
    $region8: #{tpu_custom_call.1} parent=1 // pred_region
      _
    $region9: #{tpu_custom_call.1} parent=1 // pred_fallthru
      _
    %p12 = scmp.eq.s32.totalorder 0, 0
    // Predicated region
    $region10: #{tpu_custom_call.1} parent=1 // pred_check
      %p13 = pneg %p12
    $region11: #{tpu_custom_call.1} parent=1 // pred_check_branch
      %15 = sbr.rel (%p13) target = $region13
    $region12: #{tpu_custom_call.1} parent=1 // pred_region
      %vm16 = vcmask 516096
      %17 = vst.msk [vmem:[#allocation2] sm:$0x1] %vm16, 1.0
    $region13: #{tpu_custom_call.1} parent=1 // pred_fallthru
      _
    %v18 = vld [vmem:[%s0] sm:$0xff]
    %v19 = vld [vmem:[%s0 + $0x8] sm:$0xff]
    %v20 = vld [vmem:[%s0 + $0x10] sm:$0xff]
    %v21 = vld [vmem:[%s0 + $0x18] sm:$0xff]
    %v22 = vld [vmem:[%s0 + $0x20] sm:$0xff]
    %v23 = vld [vmem:[%s0 + $0x28] sm:$0xff]
    %v24 = vld [vmem:[%s0 + $0x30] sm:$0xff]
    %v25 = vld [vmem:[%s0 + $0x38] sm:$0xff]
    %v26 = vld [vmem:[%s1] sm:$0x1]
    %27 = vxpose.xlu0.b32.start [1/16] %v26, 128
    %28 = vxpose.xlu0.b32.cont [2/16] 0, 128
    %29 = vxpose.xlu0.b32.cont [3/16] 0, 128
    %30 = vxpose.xlu0.b32.cont [4/16] 0, 128
    %31 = vxpose.xlu0.b32.cont [5/16] 0, 128
    %32 = vxpose.xlu0.b32.cont [6/16] 0, 128
    %33 = vxpose.xlu0.b32.cont [7/16] 0, 128
    %34 = vxpose.xlu0.b32.cont [8/16] 0, 128
    %35 = vxpose.xlu0.b32.cont [9/16] 0, 128
    %36 = vxpose.xlu0.b32.cont [10/16] 0, 128
    %37 = vxpose.xlu0.b32.cont [11/16] 0, 128
    %38 = vxpose.xlu0.b32.cont [12/16] 0, 128
    %39 = vxpose.xlu0.b32.cont [13/16] 0, 128
    %40 = vxpose.xlu0.b32.cont [14/16] 0, 128
    %41 = vxpose.xlu0.b32.cont [15/16] 0, 128
    %42 = vxpose.xlu0.b32.end [16/16] 0, 128
    %v43 = vpop.trf.xlu0
    %v44 = vpop.trf.xlu0
    %v45 = vpop.trf.xlu0
    %v46 = vpop.trf.xlu0
    %v47 = vpop.trf.xlu0
    %v48 = vpop.trf.xlu0
    %v49 = vpop.trf.xlu0
    %v50 = vpop.trf.xlu0
    %v51 = vpop.trf.xlu0
    %v52 = vpop.trf.xlu0
    %v53 = vpop.trf.xlu0
    %v54 = vpop.trf.xlu0
    %v55 = vpop.trf.xlu0
    %v56 = vpop.trf.xlu0
    %v57 = vpop.trf.xlu0
    %v58 = vpop.trf.xlu0
    %v59 = vlaneseq
    %v60 = vand.u32 %v59, 127
    %s61 = smul.u32 0, 32
    %v62 = vstv %s61
    %v63 = vadd.s32 %v60, %v62
    %64 = vset.pattern.permute.xlu0 0
    %65 = vperm.xlu0 %64, %v43
    %v66 = vpop.permute.xlu0 %65
    %67 = vset.pattern.permute.xlu0 0
    %68 = vperm.xlu0 %67, %v44
    %v69 = vpop.permute.xlu0 %68
    %70 = vset.pattern.permute.xlu0 0
    %71 = vperm.xlu0 %70, %v45
    %v72 = vpop.permute.xlu0 %71
    %73 = vset.pattern.permute.xlu0 0
    %74 = vperm.xlu0 %73, %v46
    %v75 = vpop.permute.xlu0 %74
    %76 = vset.pattern.permute.xlu0 0
    %77 = vperm.xlu0 %76, %v47
    %v78 = vpop.permute.xlu0 %77
    %79 = vset.pattern.permute.xlu0 0
    %80 = vperm.xlu0 %79, %v48
    %v81 = vpop.permute.xlu0 %80
    %82 = vset.pattern.permute.xlu0 0
    %83 = vperm.xlu0 %82, %v49
    %v84 = vpop.permute.xlu0 %83
    %85 = vset.pattern.permute.xlu0 0
    %86 = vperm.xlu0 %85, %v50
    %v87 = vpop.permute.xlu0 %86
    %vm88 = vcmp.eq.s32.totalorder %v63, %v66
    %vm89 = vcmp.eq.s32.totalorder %v63, %v69
    %vm90 = vcmp.eq.s32.totalorder %v63, %v72
    %vm91 = vcmp.eq.s32.totalorder %v63, %v75
    %vm92 = vcmp.eq.s32.totalorder %v63, %v78
    %vm93 = vcmp.eq.s32.totalorder %v63, %v81
    %vm94 = vcmp.eq.s32.totalorder %v63, %v84
    %vm95 = vcmp.eq.s32.totalorder %v63, %v87
    %v96 = vsel %vm88, %v18, 0.0
    %v97 = vsel %vm89, %v19, 0.0
    %v98 = vsel %vm90, %v20, 0.0
    %v99 = vsel %vm91, %v21, 0.0
    %v100 = vsel %vm92, %v22, 0.0
    %v101 = vsel %vm93, %v23, 0.0
    %v102 = vsel %vm94, %v24, 0.0
    %v103 = vsel %vm95, %v25, 0.0
    %vm104 = vcmask 261120
    %v105 = vsel %vm104, %v96, 0.0
    %106 = vadd.xlane.f32.xlu0 %v105
    %v107 = vpop.xlane.xlu0 %106
    %v108 = vsel %vm104, %v97, 0.0
    %109 = vadd.xlane.f32.xlu0 %v108
    %v110 = vpop.xlane.xlu0 %109
    %v111 = vsel %vm104, %v98, 0.0
    %112 = vadd.xlane.f32.xlu0 %v111
    %v113 = vpop.xlane.xlu0 %112
    %v114 = vsel %vm104, %v99, 0.0
    %115 = vadd.xlane.f32.xlu0 %v114
    %v116 = vpop.xlane.xlu0 %115
    %v117 = vsel %vm104, %v100, 0.0
    %118 = vadd.xlane.f32.xlu0 %v117
    %v119 = vpop.xlane.xlu0 %118
    %v120 = vsel %vm104, %v101, 0.0
    %121 = vadd.xlane.f32.xlu0 %v120
    %v122 = vpop.xlane.xlu0 %121
    %v123 = vsel %vm104, %v102, 0.0
    %124 = vadd.xlane.f32.xlu0 %v123
    %v125 = vpop.xlane.xlu0 %124
    %v126 = vsel %vm104, %v103, 0.0
    %127 = vadd.xlane.f32.xlu0 %v126
    %v128 = vpop.xlane.xlu0 %127
    %v129 = vld [vmem:[#allocation2] sm:$0x1]
    %130 = vxpose.xlu0.b32.start [1/16] %v107, 128
    %131 = vxpose.xlu0.b32.cont [2/16] %v110, 128
    %132 = vxpose.xlu0.b32.cont [3/16] %v113, 128
    %133 = vxpose.xlu0.b32.cont [4/16] %v116, 128
    %134 = vxpose.xlu0.b32.cont [5/16] %v119, 128
    %135 = vxpose.xlu0.b32.cont [6/16] %v122, 128
    %136 = vxpose.xlu0.b32.cont [7/16] %v125, 128
    %137 = vxpose.xlu0.b32.cont [8/16] %v128, 128
    %138 = vxpose.xlu0.b32.cont [9/16] 0.0, 128
    %139 = vxpose.xlu0.b32.cont [10/16] 0.0, 128
    %140 = vxpose.xlu0.b32.cont [11/16] 0.0, 128
    %141 = vxpose.xlu0.b32.cont [12/16] 0.0, 128
    %142 = vxpose.xlu0.b32.cont [13/16] 0.0, 128
    %143 = vxpose.xlu0.b32.cont [14/16] 0.0, 128
    %144 = vxpose.xlu0.b32.cont [15/16] 0.0, 128
    %145 = vxpose.xlu0.b32.end [16/16] 0.0, 128
    %v146 = vpop.trf.xlu0
    %v147 = vpop.trf.xlu0
    %v148 = vpop.trf.xlu0
    %v149 = vpop.trf.xlu0
    %v150 = vpop.trf.xlu0
    %v151 = vpop.trf.xlu0
    %v152 = vpop.trf.xlu0
    %v153 = vpop.trf.xlu0
    %v154 = vpop.trf.xlu0
    %v155 = vpop.trf.xlu0
    %v156 = vpop.trf.xlu0
    %v157 = vpop.trf.xlu0
    %v158 = vpop.trf.xlu0
    %v159 = vpop.trf.xlu0
    %v160 = vpop.trf.xlu0
    %v161 = vpop.trf.xlu0
    %v162 = vsub.f32 %v129, %v146
    %vm163 = vcmask 516096
    %164 = vst.msk [vmem:[#allocation2] sm:$0x1] %vm163, %v162
    // Predicated region
    $region14: #{tpu_custom_call.1} parent=1 // pred_check
      _
    $region15: #{tpu_custom_call.1} parent=1 // pred_check_branch
      %166 = sbr.rel (0) target = $region17
    $region16: #{tpu_custom_call.1} parent=1 // pred_region
      %s168 = ssub.s32 16, 16
      %169 = vsyncadd [#allocation3], %s168
      %s171 = sshll.u32 [#allocation2], 4
      %s172 = int_to_ptr.vmem [resolvable:$true] %s171
      %174 = dma.vmem_to_hbm [thread:$0]  %s172, 16, %s2, [#allocation3]
    $region17: #{tpu_custom_call.1} parent=1 // pred_fallthru
      _
    // Predicated region
    $region18: #{tpu_custom_call.1} parent=1 // pred_check
      _
    $region19: #{tpu_custom_call.1} parent=1 // pred_check_branch
      %176 = sbr.rel (0) target = $region21
    $region20: #{tpu_custom_call.1} parent=1 // pred_region
      %177 = dma.done [#allocation3], 16
    $region21: #{tpu_custom_call.1} parent=1 // pred_fallthru
      _
    %178 = vsyncpa [#allocation3], 1

</llo_original>
